<compile_context>
chip_gen: v7x
topology: tpu7x:2x2x1
jax: 0.10.0
libtpu: 0.0.40
codegen_flags: <defaults>
</compile_context>

<pallas_src>
import functools

import jax
import jax.numpy as jnp
from jax.experimental import pallas as pl
from jax.experimental.pallas import tpu as pltpu

LN_EPS = 1e-5


def _layer_norm_1(x, w, b):
    """nn.LayerNorm(1) semantics: per-element window -> mean == x, var == 0."""
    mean = x
    var = jnp.zeros_like(x)
    return (x - mean) * jax.lax.rsqrt(var + LN_EPS) * w + b


def _residual_block_kernel(
    ln_ref,    # SMEM (3, 2) f32: [[w, b] for ln1, ln2, ln3]
    x_ref,     # VMEM (1, 2d, L) f32   NCW block: channels on sublanes, L on lanes
    w1_ref,    # VMEM (d, 2d)  bf16    conv1 (1x1) weight, (out, in)
    b1_ref,    # VMEM (d, 1)   f32
    w2_ref,    # VMEM (d, k*d) bf16    conv2 weight, flat [out, tap*d + in]
    b2_ref,    # VMEM (d, 1)   f32
    w3_ref,    # VMEM (2d, d)  bf16    conv3 (1x1) weight, (out, in)
    b3_ref,    # VMEM (2d, 1)  f32
    o_ref,     # VMEM (1, 2d, L) f32
    pad_ref,   # VMEM scratch (d, L + pad_left + pad_right) f32
    cols_ref,  # VMEM scratch (k*d, L) f32  im2col buffer
    *, k, dilation, pad_left, pad_right, seq_len,
):
    d = w1_ref.shape[0]
    x = x_ref[0]                                                  # (2d, L) f32

    # --- LN1 -> ReLU -> conv1 (1x1 == channel matmul on the MXU) -----------
    h = _layer_norm_1(x, ln_ref[0, 0], ln_ref[0, 1])
    h = jnp.maximum(h, 0.0)
    h = jnp.dot(w1_ref[...], h.astype(jnp.bfloat16),
                preferred_element_type=jnp.float32) + b1_ref[...]  # (d, L)

    # --- LN2 -> ReLU --------------------------------------------------------
    h = _layer_norm_1(h, ln_ref[1, 0], ln_ref[1, 1])
    h = jnp.maximum(h, 0.0)

    # --- dilated conv2 via im2col: ONE (d, k*d) @ (k*d, L) matmul -----------
    # Only the pad columns need (re)zeroing; the interior is overwritten.
    if pad_left:
        pad_ref[:, :pad_left] = jnp.zeros((d, pad_left), jnp.float32)
    if pad_right:
        pad_ref[:, pad_left + seq_len:pad_left + seq_len + pad_right] = (
            jnp.zeros((d, pad_right), jnp.float32))
    pad_ref[:, pad_left:pad_left + seq_len] = h
    hp = pad_ref[...]                                              # (d, L+pads)
    for j in range(k):                         # static unroll: build im2col
        off = j * dilation
        cols_ref[j * d:(j + 1) * d, :] = hp[:, off:off + seq_len]
    h = jnp.dot(w2_ref[...], cols_ref[...].astype(jnp.bfloat16),
                preferred_element_type=jnp.float32) + b2_ref[...]  # (d, L)

    # --- LN3 -> ReLU -> conv3 (1x1) -----------------------------------------
    h = _layer_norm_1(h, ln_ref[2, 0], ln_ref[2, 1])
    h = jnp.maximum(h, 0.0)
    h = jnp.dot(w3_ref[...], h.astype(jnp.bfloat16),
                preferred_element_type=jnp.float32) + b3_ref[...]  # (2d, L)

    # --- residual add, lane-dense store -------------------------------------
    o_ref[0] = h + x


def residual_block_relu(x, params, *, k, dilation, decoder=False):
    """x: (B, 2d, L) float32 (PyTorch NCW).  Returns (B, 2d, L) float32."""
    B, twod, L = x.shape
    d = twod // 2
    if decoder:
        pad_left = (k - 1) * dilation      # F.pad(x, (receptive_field, 0))
        pad_right = 0
    else:
        if ((k - 1) * dilation) % 2 != 0:
            raise ValueError(
                "encoder mode needs (k-1)*dilation even so conv2 preserves "
                "the sequence length (required for the residual add)")
        pad_left = pad_right = ((k - 1) * dilation) // 2

    kernel = functools.partial(
        _residual_block_kernel, k=k, dilation=dilation,
        pad_left=pad_left, pad_right=pad_right, seq_len=L)

    x = x.astype(jnp.float32)
    w1 = params["w1"].astype(jnp.bfloat16)
    w2 = params["w2"].astype(jnp.bfloat16)
    w3 = params["w3"].astype(jnp.bfloat16)

    return pl.pallas_call(
        kernel,
        out_shape=jax.ShapeDtypeStruct((B, twod, L), jnp.float32),
        grid=(B,),
        in_specs=[
            pl.BlockSpec(memory_space=pltpu.MemorySpace.SMEM),      # ln params
            pl.BlockSpec((1, twod, L), lambda b: (b, 0, 0)),        # x (NCW)
            pl.BlockSpec((d, twod), lambda b: (0, 0)),              # w1
            pl.BlockSpec((d, 1), lambda b: (0, 0)),                 # b1
            pl.BlockSpec((d, k * d), lambda b: (0, 0)),             # w2 (flat)
            pl.BlockSpec((d, 1), lambda b: (0, 0)),                 # b2
            pl.BlockSpec((twod, d), lambda b: (0, 0)),              # w3
            pl.BlockSpec((twod, 1), lambda b: (0, 0)),              # b3
        ],
        out_specs=pl.BlockSpec((1, twod, L), lambda b: (b, 0, 0)),
        scratch_shapes=[
            pltpu.VMEM((d, L + pad_left + pad_right), jnp.float32),  # padded h
            pltpu.VMEM((k * d, L), jnp.float32),                     # im2col
        ],
        compiler_params=pltpu.CompilerParams(
            dimension_semantics=("parallel",)),
    )(params["ln"].astype(jnp.float32), x,
      w1, params["b1"].astype(jnp.float32),
      w2, params["b2"].astype(jnp.float32),
      w3, params["b3"].astype(jnp.float32))


def reference(x, params, *, k, dilation, decoder=False):
    """Plain-JAX f32 replica of the PyTorch forward (same weight layouts)."""
    ln = params["ln"]
    B, twod, L = x.shape
    d = twod // 2

    def ln_1(h, w, b):
        return (h - h) * jax.lax.rsqrt(jnp.zeros_like(h) + LN_EPS) * w + b

    h = jnp.maximum(ln_1(x, ln[0, 0], ln[0, 1]), 0.0)
    h = jnp.einsum("oc,bcl->bol", params["w1"], h) + params["b1"][None, :, :]
    h = jnp.maximum(ln_1(h, ln[1, 0], ln[1, 1]), 0.0)
    if decoder:
        hp = jnp.pad(h, ((0, 0), (0, 0), ((k - 1) * dilation, 0)))
    else:
        p = ((k - 1) * dilation) // 2
        hp = jnp.pad(h, ((0, 0), (0, 0), (p, p)))
    w2 = params["w2"].reshape(d, k, d)                   # [out, tap, in]
    acc = 0.0
    for j in range(k):
        acc = acc + jnp.einsum("oc,bcl->bol", w2[:, j, :],
                               hp[:, :, j * dilation:j * dilation + L])
    h = acc + params["b2"][None, :, :]
    h = jnp.maximum(ln_1(h, ln[2, 0], ln[2, 1]), 0.0)
    h = jnp.einsum("oc,bcl->bol", params["w3"], h) + params["b3"][None, :, :]
    return h + x


if __name__ == "__main__":
    B, d, L = 2, 8, 128          # channels = 2*d = 16 (sublanes), L = 128 (lanes)
    k, dilation = 3, 2           # encoder padding = (k-1)*dilation//2 = 2
    key = jax.random.PRNGKey(0)
    keys = jax.random.split(key, 7)

    x = jax.random.normal(keys[0], (B, 2 * d, L), jnp.float32)
    params = {
        # LayerNorm(1) scalars (weight, bias) for ln1/ln2/ln3 — non-default to
        # exercise the full constant path through the convs.
        "ln": jnp.array([[1.1, 0.3], [0.9, 0.5], [1.2, 0.2]], jnp.float32),
        # conv1: PyTorch (out=d, in=2d, 1) stored as (d, 2d)
        "w1": 0.1 * jax.random.normal(keys[1], (d, 2 * d), jnp.float32),
        "b1": 0.1 * jax.random.normal(keys[2], (d, 1), jnp.float32),
        # conv2: PyTorch (out=d, in=d, k) stored flat as (d, k*d) = [out, tap*d+in]
        "w2": 0.1 * jax.random.normal(keys[3], (d, k * d), jnp.float32),
        "b2": 0.1 * jax.random.normal(keys[4], (d, 1), jnp.float32),
        # conv3: PyTorch (out=2d, in=d, 1) stored as (2d, d)
        "w3": 0.1 * jax.random.normal(keys[5], (2 * d, d), jnp.float32),
        "b3": 0.1 * jax.random.normal(keys[6], (2 * d, 1), jnp.float32),
    }

    for decoder in (False, True):
        out = residual_block_relu(x, params, k=k, dilation=dilation,
                                  decoder=decoder)
        out = jax.block_until_ready(out)
        ref = reference(x, params, k=k, dilation=dilation, decoder=decoder)
        assert out.shape == x.shape
        err = float(jnp.max(jnp.abs(out - ref)))
        assert err < 1e-2, err
    print("KERNEL_OK")
</pallas_src>

<mosaic_0001>
module attributes {stable_mosaic.version = 11 : i64} {
  func.func @_residual_block_kernel(%arg0: i32, %arg1: memref<3x2xf32, #tpu.memory_space<smem>>, %arg2: memref<1x16x128xf32, #tpu.memory_space<vmem>>, %arg3: memref<8x16xbf16, #tpu.memory_space<vmem>>, %arg4: memref<8x1xf32, #tpu.memory_space<vmem>>, %arg5: memref<8x24xbf16, #tpu.memory_space<vmem>>, %arg6: memref<8x1xf32, #tpu.memory_space<vmem>>, %arg7: memref<16x8xbf16, #tpu.memory_space<vmem>>, %arg8: memref<16x1xf32, #tpu.memory_space<vmem>>, %arg9: memref<1x16x128xf32, #tpu.memory_space<vmem>>, %arg10: memref<8x132xf32, #tpu.memory_space<vmem>>, %arg11: memref<24x128xf32, #tpu.memory_space<vmem>>) attributes {dimension_semantics = [#tpu.dimension_semantics<parallel>], iteration_bounds = array<i64: 2>, scalar_prefetch = 0 : i64, scratch_operands = 2 : i64, tpu.core_type = #tpu.core_type<tc>, window_params = [{transform_indices = @transform_0, window_bounds = array<i64: 3, 2>}, {transform_indices = @transform_1, window_bounds = array<i64: 1, 16, 128>}, {pipeline_mode = #tpu.pipeline_mode<synchronous>, transform_indices = @transform_2, window_bounds = array<i64: 8, 16>}, {pipeline_mode = #tpu.pipeline_mode<synchronous>, transform_indices = @transform_3, window_bounds = array<i64: 8, 1>}, {pipeline_mode = #tpu.pipeline_mode<synchronous>, transform_indices = @transform_4, window_bounds = array<i64: 8, 24>}, {pipeline_mode = #tpu.pipeline_mode<synchronous>, transform_indices = @transform_5, window_bounds = array<i64: 8, 1>}, {pipeline_mode = #tpu.pipeline_mode<synchronous>, transform_indices = @transform_6, window_bounds = array<i64: 16, 8>}, {pipeline_mode = #tpu.pipeline_mode<synchronous>, transform_indices = @transform_7, window_bounds = array<i64: 16, 1>}, {transform_indices = @transform_8, window_bounds = array<i64: 1, 16, 128>}]} {
    %c0 = arith.constant 0 : index
    %c0_0 = arith.constant 0 : index
    %c0_1 = arith.constant 0 : index
    %0 = vector.load %arg2[%c0, %c0_0, %c0_1] : memref<1x16x128xf32, #tpu.memory_space<vmem>>, vector<1x16x128xf32>
    %1 = vector.shape_cast %0 : vector<1x16x128xf32> to vector<16x128xf32>
    %c0_2 = arith.constant 0 : index
    %c0_3 = arith.constant 0 : index
    %2 = memref.load %arg1[%c0_2, %c0_3] : memref<3x2xf32, #tpu.memory_space<smem>>
    %c0_4 = arith.constant 0 : index
    %c1 = arith.constant 1 : index
    %3 = memref.load %arg1[%c0_4, %c1] : memref<3x2xf32, #tpu.memory_space<smem>>
    %cst = arith.constant 0.000000e+00 : f32
    %4 = vector.broadcast %cst : f32 to vector<16x128xf32>
    %5 = arith.subf %1, %1 : vector<16x128xf32>
    %cst_5 = arith.constant 9.99999974E-6 : f32
    %6 = vector.broadcast %cst_5 : f32 to vector<16x128xf32>
    %7 = arith.addf %4, %6 : vector<16x128xf32>
    %8 = math.rsqrt %7 : vector<16x128xf32>
    %9 = arith.mulf %5, %8 : vector<16x128xf32>
    %10 = vector.broadcast %2 : f32 to vector<16x128xf32>
    %11 = arith.mulf %9, %10 : vector<16x128xf32>
    %12 = vector.broadcast %3 : f32 to vector<16x128xf32>
    %13 = arith.addf %11, %12 : vector<16x128xf32>
    %cst_6 = arith.constant 0.000000e+00 : f32
    %14 = vector.broadcast %cst_6 : f32 to vector<16x128xf32>
    %15 = arith.maximumf %13, %14 : vector<16x128xf32>
    %c0_7 = arith.constant 0 : index
    %c0_8 = arith.constant 0 : index
    %16 = vector.load %arg3[%c0_7, %c0_8] : memref<8x16xbf16, #tpu.memory_space<vmem>>, vector<8x16xbf16>
    %17 = arith.truncf %15 : vector<16x128xf32> to vector<16x128xbf16>
    %cst_9 = arith.constant dense<0.000000e+00> : vector<8x128xf32>
    %18 = tpu.matmul %16, %17, %cst_9 {dimension_numbers = #tpu.dot_dimension_numbers<[1], [0], [0], [1], [0, 0, 1, 1], [], []>} : vector<8x16xbf16>, vector<16x128xbf16>, vector<8x128xf32> -> vector<8x128xf32>
    %c0_10 = arith.constant 0 : index
    %c0_11 = arith.constant 0 : index
    %19 = vector.load %arg4[%c0_10, %c0_11] : memref<8x1xf32, #tpu.memory_space<vmem>>, vector<8x1xf32>
    %20 = vector.broadcast %19 : vector<8x1xf32> to vector<8x128xf32>
    %21 = arith.addf %18, %20 : vector<8x128xf32>
    %c1_12 = arith.constant 1 : index
    %c0_13 = arith.constant 0 : index
    %22 = memref.load %arg1[%c1_12, %c0_13] : memref<3x2xf32, #tpu.memory_space<smem>>
    %c1_14 = arith.constant 1 : index
    %c1_15 = arith.constant 1 : index
    %23 = memref.load %arg1[%c1_14, %c1_15] : memref<3x2xf32, #tpu.memory_space<smem>>
    %cst_16 = arith.constant 0.000000e+00 : f32
    %24 = vector.broadcast %cst_16 : f32 to vector<8x128xf32>
    %25 = arith.subf %21, %21 : vector<8x128xf32>
    %cst_17 = arith.constant 9.99999974E-6 : f32
    %26 = vector.broadcast %cst_17 : f32 to vector<8x128xf32>
    %27 = arith.addf %24, %26 : vector<8x128xf32>
    %28 = math.rsqrt %27 : vector<8x128xf32>
    %29 = arith.mulf %25, %28 : vector<8x128xf32>
    %30 = vector.broadcast %22 : f32 to vector<8x128xf32>
    %31 = arith.mulf %29, %30 : vector<8x128xf32>
    %32 = vector.broadcast %23 : f32 to vector<8x128xf32>
    %33 = arith.addf %31, %32 : vector<8x128xf32>
    %cst_18 = arith.constant 0.000000e+00 : f32
    %34 = vector.broadcast %cst_18 : f32 to vector<8x128xf32>
    %35 = arith.maximumf %33, %34 : vector<8x128xf32>
    %cst_19 = arith.constant 0.000000e+00 : f32
    %36 = vector.broadcast %cst_19 : f32 to vector<8x2xf32>
    %c0_20 = arith.constant 0 : index
    %c0_21 = arith.constant 0 : index
    %37 = vector.load %arg10[%c0_20, %c0_21] : memref<8x132xf32, #tpu.memory_space<vmem>>, vector<8x2xf32>
    tpu.vector_store %arg10[%c0_20, %c0_21], %36 {strides = array<i32>} : memref<8x132xf32, #tpu.memory_space<vmem>>, vector<8x2xf32>,
    %cst_22 = arith.constant 0.000000e+00 : f32
    %38 = vector.broadcast %cst_22 : f32 to vector<8x2xf32>
    %c0_23 = arith.constant 0 : index
    %c130 = arith.constant 130 : index
    %39 = vector.load %arg10[%c0_23, %c130] : memref<8x132xf32, #tpu.memory_space<vmem>>, vector<8x2xf32>
    tpu.vector_store %arg10[%c0_23, %c130], %38 {strides = array<i32>} : memref<8x132xf32, #tpu.memory_space<vmem>>, vector<8x2xf32>,
    %c0_24 = arith.constant 0 : index
    %c2 = arith.constant 2 : index
    %40 = vector.load %arg10[%c0_24, %c2] : memref<8x132xf32, #tpu.memory_space<vmem>>, vector<8x128xf32>
    tpu.vector_store %arg10[%c0_24, %c2], %35 {strides = array<i32>} : memref<8x132xf32, #tpu.memory_space<vmem>>, vector<8x128xf32>,
    %c0_25 = arith.constant 0 : index
    %c0_26 = arith.constant 0 : index
    %41 = vector.load %arg10[%c0_25, %c0_26] : memref<8x132xf32, #tpu.memory_space<vmem>>, vector<8x132xf32>
    %42 = vector.extract_strided_slice %41 {offsets = [0, 0], sizes = [8, 128], strides = [1, 1]} : vector<8x132xf32> to vector<8x128xf32>
    %c0_27 = arith.constant 0 : index
    %c0_28 = arith.constant 0 : index
    %43 = vector.load %arg11[%c0_27, %c0_28] : memref<24x128xf32, #tpu.memory_space<vmem>>, vector<8x128xf32>
    tpu.vector_store %arg11[%c0_27, %c0_28], %42 {strides = array<i32>} : memref<24x128xf32, #tpu.memory_space<vmem>>, vector<8x128xf32>,
    %44 = vector.extract_strided_slice %41 {offsets = [0, 2], sizes = [8, 128], strides = [1, 1]} : vector<8x132xf32> to vector<8x128xf32>
    %c8 = arith.constant 8 : index
    %c0_29 = arith.constant 0 : index
    %45 = vector.load %arg11[%c8, %c0_29] : memref<24x128xf32, #tpu.memory_space<vmem>>, vector<8x128xf32>
    tpu.vector_store %arg11[%c8, %c0_29], %44 {strides = array<i32>} : memref<24x128xf32, #tpu.memory_space<vmem>>, vector<8x128xf32>,
    %46 = vector.extract_strided_slice %41 {offsets = [0, 4], sizes = [8, 128], strides = [1, 1]} : vector<8x132xf32> to vector<8x128xf32>
    %c16 = arith.constant 16 : index
    %c0_30 = arith.constant 0 : index
    %47 = vector.load %arg11[%c16, %c0_30] : memref<24x128xf32, #tpu.memory_space<vmem>>, vector<8x128xf32>
    tpu.vector_store %arg11[%c16, %c0_30], %46 {strides = array<i32>} : memref<24x128xf32, #tpu.memory_space<vmem>>, vector<8x128xf32>,
    %c0_31 = arith.constant 0 : index
    %c0_32 = arith.constant 0 : index
    %48 = vector.load %arg5[%c0_31, %c0_32] : memref<8x24xbf16, #tpu.memory_space<vmem>>, vector<8x24xbf16>
    %c0_33 = arith.constant 0 : index
    %c0_34 = arith.constant 0 : index
    %49 = vector.load %arg11[%c0_33, %c0_34] : memref<24x128xf32, #tpu.memory_space<vmem>>, vector<24x128xf32>
    %50 = arith.truncf %49 : vector<24x128xf32> to vector<24x128xbf16>
    %cst_35 = arith.constant dense<0.000000e+00> : vector<8x128xf32>
    %51 = tpu.matmul %48, %50, %cst_35 {dimension_numbers = #tpu.dot_dimension_numbers<[1], [0], [0], [1], [0, 0, 1, 1], [], []>} : vector<8x24xbf16>, vector<24x128xbf16>, vector<8x128xf32> -> vector<8x128xf32>
    %c0_36 = arith.constant 0 : index
    %c0_37 = arith.constant 0 : index
    %52 = vector.load %arg6[%c0_36, %c0_37] : memref<8x1xf32, #tpu.memory_space<vmem>>, vector<8x1xf32>
    %53 = vector.broadcast %52 : vector<8x1xf32> to vector<8x128xf32>
    %54 = arith.addf %51, %53 : vector<8x128xf32>
    %c2_38 = arith.constant 2 : index
    %c0_39 = arith.constant 0 : index
    %55 = memref.load %arg1[%c2_38, %c0_39] : memref<3x2xf32, #tpu.memory_space<smem>>
    %c2_40 = arith.constant 2 : index
    %c1_41 = arith.constant 1 : index
    %56 = memref.load %arg1[%c2_40, %c1_41] : memref<3x2xf32, #tpu.memory_space<smem>>
    %cst_42 = arith.constant 0.000000e+00 : f32
    %57 = vector.broadcast %cst_42 : f32 to vector<8x128xf32>
    %58 = arith.subf %54, %54 : vector<8x128xf32>
    %cst_43 = arith.constant 9.99999974E-6 : f32
    %59 = vector.broadcast %cst_43 : f32 to vector<8x128xf32>
    %60 = arith.addf %57, %59 : vector<8x128xf32>
    %61 = math.rsqrt %60 : vector<8x128xf32>
    %62 = arith.mulf %58, %61 : vector<8x128xf32>
    %63 = vector.broadcast %55 : f32 to vector<8x128xf32>
    %64 = arith.mulf %62, %63 : vector<8x128xf32>
    %65 = vector.broadcast %56 : f32 to vector<8x128xf32>
    %66 = arith.addf %64, %65 : vector<8x128xf32>
    %cst_44 = arith.constant 0.000000e+00 : f32
    %67 = vector.broadcast %cst_44 : f32 to vector<8x128xf32>
    %68 = arith.maximumf %66, %67 : vector<8x128xf32>
    %c0_45 = arith.constant 0 : index
    %c0_46 = arith.constant 0 : index
    %69 = vector.load %arg7[%c0_45, %c0_46] : memref<16x8xbf16, #tpu.memory_space<vmem>>, vector<16x8xbf16>
    %70 = arith.truncf %68 : vector<8x128xf32> to vector<8x128xbf16>
    %cst_47 = arith.constant dense<0.000000e+00> : vector<16x128xf32>
    %71 = tpu.matmul %69, %70, %cst_47 {dimension_numbers = #tpu.dot_dimension_numbers<[1], [0], [0], [1], [0, 0, 1, 1], [], []>} : vector<16x8xbf16>, vector<8x128xbf16>, vector<16x128xf32> -> vector<16x128xf32>
    %c0_48 = arith.constant 0 : index
    %c0_49 = arith.constant 0 : index
    %72 = vector.load %arg8[%c0_48, %c0_49] : memref<16x1xf32, #tpu.memory_space<vmem>>, vector<16x1xf32>
    %73 = vector.broadcast %72 : vector<16x1xf32> to vector<16x128xf32>
    %74 = arith.addf %71, %73 : vector<16x128xf32>
    %75 = arith.addf %74, %1 : vector<16x128xf32>
    %c0_50 = arith.constant 0 : index
    %c0_51 = arith.constant 0 : index
    %c0_52 = arith.constant 0 : index
    %76 = vector.load %arg9[%c0_50, %c0_51, %c0_52] : memref<1x16x128xf32, #tpu.memory_space<vmem>>, vector<1x16x128xf32>
    %77 = vector.shape_cast %76 : vector<1x16x128xf32> to vector<16x128xf32>
    %78 = vector.shape_cast %75 : vector<16x128xf32> to vector<1x16x128xf32>
    tpu.vector_store %arg9[%c0_50, %c0_51, %c0_52], %78 {strides = array<i32>} : memref<1x16x128xf32, #tpu.memory_space<vmem>>, vector<1x16x128xf32>,
    return
  }
  func.func @transform_0(%arg0: i32) -> (i32, i32) {
    %c0_i32 = arith.constant 0 : i32
    %c0_i32_0 = arith.constant 0 : i32
    %c0_i32_1 = arith.constant 0 : i32
    return %c0_i32, %c0_i32_0 : i32, i32
  }
  func.func @transform_1(%arg0: i32) -> (i32, i32, i32) {
    %c0_i32 = arith.constant 0 : i32
    %c0_i32_0 = arith.constant 0 : i32
    %c0_i32_1 = arith.constant 0 : i32
    return %arg0, %c0_i32, %c0_i32_0 : i32, i32, i32
  }
  func.func @transform_2(%arg0: i32) -> (i32, i32) {
    %c0_i32 = arith.constant 0 : i32
    %c0_i32_0 = arith.constant 0 : i32
    %c0_i32_1 = arith.constant 0 : i32
    return %c0_i32, %c0_i32_0 : i32, i32
  }
  func.func @transform_3(%arg0: i32) -> (i32, i32) {
    %c0_i32 = arith.constant 0 : i32
    %c0_i32_0 = arith.constant 0 : i32
    %c0_i32_1 = arith.constant 0 : i32
    return %c0_i32, %c0_i32_0 : i32, i32
  }
  func.func @transform_4(%arg0: i32) -> (i32, i32) {
    %c0_i32 = arith.constant 0 : i32
    %c0_i32_0 = arith.constant 0 : i32
    %c0_i32_1 = arith.constant 0 : i32
    return %c0_i32, %c0_i32_0 : i32, i32
  }
  func.func @transform_5(%arg0: i32) -> (i32, i32) {
    %c0_i32 = arith.constant 0 : i32
    %c0_i32_0 = arith.constant 0 : i32
    %c0_i32_1 = arith.constant 0 : i32
    return %c0_i32, %c0_i32_0 : i32, i32
  }
  func.func @transform_6(%arg0: i32) -> (i32, i32) {
    %c0_i32 = arith.constant 0 : i32
    %c0_i32_0 = arith.constant 0 : i32
    %c0_i32_1 = arith.constant 0 : i32
    return %c0_i32, %c0_i32_0 : i32, i32
  }
  func.func @transform_7(%arg0: i32) -> (i32, i32) {
    %c0_i32 = arith.constant 0 : i32
    %c0_i32_0 = arith.constant 0 : i32
    %c0_i32_1 = arith.constant 0 : i32
    return %c0_i32, %c0_i32_0 : i32, i32
  }
  func.func @transform_8(%arg0: i32) -> (i32, i32, i32) {
    %c0_i32 = arith.constant 0 : i32
    %c0_i32_0 = arith.constant 0 : i32
    %c0_i32_1 = arith.constant 0 : i32
    return %arg0, %c0_i32, %c0_i32_0 : i32, i32, i32
  }
}

</mosaic_0001>

<llo_original>
// kernel: tpu_custom_call.1
$region0: #{tpu_custom_call.1}
  #allocation0 [shape = 'u32[]', space=smem, size = 0x4, offset = 0x4, fixed_abs, tag = 'smem constant byte address 0x4 - core index']
  #allocation1 [shape = 'u32[144,128]{1,0:T(1,128)}', space=vmem, size = 0x12000, scoped, tag = 'internal scratch']
  #allocation2 [shape = 'f32[8,132]{1,0:T(8,128)}', space=vmem, size = 0x2000, scoped, tag = 'scratch operand']
  #allocation3 [shape = 'f32[24,128]{1,0:T(8,128)}', space=vmem, size = 0x3000, scoped, tag = 'scratch operand']
  %s0 = inlined_call_operand.vmem [shape: f32[3,2], index: 0, kind: input, shape index: {}]
  %s1 = inlined_call_operand.vmem [shape: f32[2,16,128], index: 1, kind: input, shape index: {}]
  %s2 = inlined_call_operand.vmem [shape: bf16[8,16], index: 2, kind: input, shape index: {}]
  %s3 = inlined_call_operand.vmem [shape: f32[8,1], index: 3, kind: input, shape index: {}]
  %s4 = inlined_call_operand.vmem [shape: bf16[8,24], index: 4, kind: input, shape index: {}]
  %s5 = inlined_call_operand.vmem [shape: f32[8,1], index: 5, kind: input, shape index: {}]
  %s6 = inlined_call_operand.vmem [shape: bf16[16,8], index: 6, kind: input, shape index: {}]
  %s7 = inlined_call_operand.vmem [shape: f32[16,1], index: 7, kind: input, shape index: {}]
  %s8 = inlined_call_operand.hbm [shape: f32[2,16,128], index: 8, kind: output, shape index: {}]
  %s9 = sld [smem:[#allocation0]]
  $region69: #{tpu_custom_call.1} parent=0
    _
  %s11 = ssub.s32 1, %s9
  %s12 = scalar_select 0, %s11, %s9
  $region1: #{tpu_custom_call.1} parent=0
    #allocation4 [shape = 'u8[2048]{0}', space=smem, size = 0x800, scoped, tag = 'input window, operand 0, single buffered']
    #allocation5 [shape = 's32[2]{0}', space=sflag, size = 0x8, scoped, tag = 'scoped memory for tpu_custom_call.1']
    #allocation6 [shape = 's32[2]{0}', space=sflag, size = 0x8, scoped, tag = 'scoped memory for tpu_custom_call.1']
    #allocation7 [shape = 'u8[16384]{0}', space=vmem, size = 0x4000, scoped, tag = 'output window, operand 0']
    %13 = vsyncpa [#allocation6], 0
    %14 = vsyncpa [#allocation5], 0
    %s15 = scalar_lea.sflag [#allocation5], 1
    %16 = vsyncpa %s15, 0
    loop: start=0, step=1, limit=4
    $region2: #{tpu_custom_call.1} parent=1 // loop_pre_header
      _
    $region3: #{tpu_custom_call.1} parent=1 // loop_header
      %s18 = sphi 0, %s22
      %p19 = scmp.ge.s32.totalorder %s18, 4
      %s26 = sphi 0, %s26
      %s28 = sphi 0, %s26
      %s29 = sphi 0, %s28
      %s43 = sphi 0, %s29
      %s49 = sphi 0, %s51
      %s52 = sphi 0, %s49
      %s53 = sphi 0, %s52
      %s69 = sphi 0, %s53
      %s73 = sphi 0, %s73
      %s75 = sphi 0, %s73
      %s76 = sphi 0, %s75
      %s90 = sphi 0, %s76
      %s94 = sphi 0, %s94
      %s96 = sphi 0, %s94
      %s97 = sphi 0, %s96
      %s111 = sphi 0, %s97
      %s115 = sphi 0, %s115
      %s117 = sphi 0, %s115
      %s118 = sphi 0, %s117
      %s132 = sphi 0, %s118
      %s136 = sphi 0, %s136
      %s138 = sphi 0, %s136
      %s139 = sphi 0, %s138
      %s153 = sphi 0, %s139
      %s157 = sphi 0, %s157
      %s159 = sphi 0, %s157
      %s160 = sphi 0, %s159
      %s174 = sphi 0, %s160
      %s178 = sphi 0, %s178
      %s180 = sphi 0, %s178
      %s181 = sphi 0, %s180
      %s195 = sphi 0, %s181
      %s201 = sphi 0, %s203
      %s204 = sphi 0, %s201
      %s205 = sphi 0, %s204
      %s221 = sphi 0, %s205
    $region4: #{tpu_custom_call.1} parent=1 // loop_header_branch
      %21 = sbr.rel (%p19) target = $region8
    $region5: #{tpu_custom_call.1} parent=1 // loop_body
      %s23 = ssub.s32 %s18, 1
      %s24 = ssub.s32 %s18, 2
      %s25 = sadd.s32 %s18, 1
      %s27 = sadd.s32 %s26, 1
      %p30 = scmp.eq.s32.totalorder %s18, 1
      %p31 = scmp.ne.s32.totalorder %s26, %s28
      %p32 = scmp.eq.s32.totalorder %s18, 0
      %p33 = por %p31, %p32
      %p34 = scmp.ne.s32.totalorder %s26, %s28
      %p35 = scmp.eq.s32.totalorder %s23, 1
      %p36 = por %p34, %p35
      %p37 = scmp.ne.s32.totalorder %s28, %s29
      %p38 = scmp.eq.s32.totalorder %s23, 0
      %p39 = por %p37, %p38
      %p40 = scmp.ne.s32.totalorder %s28, %s29
      %p41 = scmp.eq.s32.totalorder %s24, 1
      %p42 = por %p40, %p41
      %p44 = scmp.ne.s32.totalorder %s29, %s43
      %p45 = scmp.eq.s32.totalorder %s24, 0
      %p46 = por %p44, %p45
      %s47 = ssub.s32 %s18, %s25
      %p48 = scmp.eq.s32.totalorder %s47, 0
      %s50 = sadd.s32 %s49, 1
      %s51 = scalar_select %p48, %s49, %s50
      %p54 = pneg %p48
      %p55 = scmp.eq.s32.totalorder %s18, 1
      %p56 = por %p54, %p55
      %p57 = scmp.ne.s32.totalorder %s49, %s52
      %p58 = scmp.eq.s32.totalorder %s18, 0
      %p59 = por %p57, %p58
      %p60 = scmp.ne.s32.totalorder %s49, %s52
      %p61 = scmp.eq.s32.totalorder %s23, 1
      %p62 = por %p60, %p61
      %p63 = scmp.ne.s32.totalorder %s52, %s53
      %p64 = scmp.eq.s32.totalorder %s23, 0
      %p65 = por %p63, %p64
      %p66 = scmp.ne.s32.totalorder %s52, %s53
      %p67 = scmp.eq.s32.totalorder %s24, 1
      %p68 = por %p66, %p67
      %p70 = scmp.ne.s32.totalorder %s53, %s69
      %p71 = scmp.eq.s32.totalorder %s24, 0
      %p72 = por %p70, %p71
      %s74 = sadd.s32 %s73, 1
      %p77 = scmp.eq.s32.totalorder %s18, 1
      %p78 = scmp.ne.s32.totalorder %s73, %s75
      %p79 = scmp.eq.s32.totalorder %s18, 0
      %p80 = por %p78, %p79
      %p81 = scmp.ne.s32.totalorder %s73, %s75
      %p82 = scmp.eq.s32.totalorder %s23, 1
      %p83 = por %p81, %p82
      %p84 = scmp.ne.s32.totalorder %s75, %s76
      %p85 = scmp.eq.s32.totalorder %s23, 0
      %p86 = por %p84, %p85
      %p87 = scmp.ne.s32.totalorder %s75, %s76
      %p88 = scmp.eq.s32.totalorder %s24, 1
      %p89 = por %p87, %p88
      %p91 = scmp.ne.s32.totalorder %s76, %s90
      %p92 = scmp.eq.s32.totalorder %s24, 0
      %p93 = por %p91, %p92
      %s95 = sadd.s32 %s94, 1
      %p98 = scmp.eq.s32.totalorder %s18, 1
      %p99 = scmp.ne.s32.totalorder %s94, %s96
      %p100 = scmp.eq.s32.totalorder %s18, 0
      %p101 = por %p99, %p100
      %p102 = scmp.ne.s32.totalorder %s94, %s96
      %p103 = scmp.eq.s32.totalorder %s23, 1
      %p104 = por %p102, %p103
      %p105 = scmp.ne.s32.totalorder %s96, %s97
      %p106 = scmp.eq.s32.totalorder %s23, 0
      %p107 = por %p105, %p106
      %p108 = scmp.ne.s32.totalorder %s96, %s97
      %p109 = scmp.eq.s32.totalorder %s24, 1
      %p110 = por %p108, %p109
      %p112 = scmp.ne.s32.totalorder %s97, %s111
      %p113 = scmp.eq.s32.totalorder %s24, 0
      %p114 = por %p112, %p113
      %s116 = sadd.s32 %s115, 1
      %p119 = scmp.eq.s32.totalorder %s18, 1
      %p120 = scmp.ne.s32.totalorder %s115, %s117
      %p121 = scmp.eq.s32.totalorder %s18, 0
      %p122 = por %p120, %p121
      %p123 = scmp.ne.s32.totalorder %s115, %s117
      %p124 = scmp.eq.s32.totalorder %s23, 1
      %p125 = por %p123, %p124
      %p126 = scmp.ne.s32.totalorder %s117, %s118
      %p127 = scmp.eq.s32.totalorder %s23, 0
      %p128 = por %p126, %p127
      %p129 = scmp.ne.s32.totalorder %s117, %s118
      %p130 = scmp.eq.s32.totalorder %s24, 1
      %p131 = por %p129, %p130
      %p133 = scmp.ne.s32.totalorder %s118, %s132
      %p134 = scmp.eq.s32.totalorder %s24, 0
      %p135 = por %p133, %p134
      %s137 = sadd.s32 %s136, 1
      %p140 = scmp.eq.s32.totalorder %s18, 1
      %p141 = scmp.ne.s32.totalorder %s136, %s138
      %p142 = scmp.eq.s32.totalorder %s18, 0
      %p143 = por %p141, %p142
      %p144 = scmp.ne.s32.totalorder %s136, %s138
      %p145 = scmp.eq.s32.totalorder %s23, 1
      %p146 = por %p144, %p145
      %p147 = scmp.ne.s32.totalorder %s138, %s139
      %p148 = scmp.eq.s32.totalorder %s23, 0
      %p149 = por %p147, %p148
      %p150 = scmp.ne.s32.totalorder %s138, %s139
      %p151 = scmp.eq.s32.totalorder %s24, 1
      %p152 = por %p150, %p151
      %p154 = scmp.ne.s32.totalorder %s139, %s153
      %p155 = scmp.eq.s32.totalorder %s24, 0
      %p156 = por %p154, %p155
      %s158 = sadd.s32 %s157, 1
      %p161 = scmp.eq.s32.totalorder %s18, 1
      %p162 = scmp.ne.s32.totalorder %s157, %s159
      %p163 = scmp.eq.s32.totalorder %s18, 0
      %p164 = por %p162, %p163
      %p165 = scmp.ne.s32.totalorder %s157, %s159
      %p166 = scmp.eq.s32.totalorder %s23, 1
      %p167 = por %p165, %p166
      %p168 = scmp.ne.s32.totalorder %s159, %s160
      %p169 = scmp.eq.s32.totalorder %s23, 0
      %p170 = por %p168, %p169
      %p171 = scmp.ne.s32.totalorder %s159, %s160
      %p172 = scmp.eq.s32.totalorder %s24, 1
      %p173 = por %p171, %p172
      %p175 = scmp.ne.s32.totalorder %s160, %s174
      %p176 = scmp.eq.s32.totalorder %s24, 0
      %p177 = por %p175, %p176
      %s179 = sadd.s32 %s178, 1
      %p182 = scmp.eq.s32.totalorder %s18, 1
      %p183 = scmp.ne.s32.totalorder %s178, %s180
      %p184 = scmp.eq.s32.totalorder %s18, 0
      %p185 = por %p183, %p184
      %p186 = scmp.ne.s32.totalorder %s178, %s180
      %p187 = scmp.eq.s32.totalorder %s23, 1
      %p188 = por %p186, %p187
      %p189 = scmp.ne.s32.totalorder %s180, %s181
      %p190 = scmp.eq.s32.totalorder %s23, 0
      %p191 = por %p189, %p190
      %p192 = scmp.ne.s32.totalorder %s180, %s181
      %p193 = scmp.eq.s32.totalorder %s24, 1
      %p194 = por %p192, %p193
      %p196 = scmp.ne.s32.totalorder %s181, %s195
      %p197 = scmp.eq.s32.totalorder %s24, 0
      %p198 = por %p196, %p197
      %s199 = ssub.s32 %s18, %s25
      %p200 = scmp.eq.s32.totalorder %s199, 0
      %s202 = sadd.s32 %s201, 1
      %s203 = scalar_select %p200, %s201, %s202
      %p206 = pneg %p200
      %p207 = scmp.eq.s32.totalorder %s18, 1
      %p208 = por %p206, %p207
      %p209 = scmp.ne.s32.totalorder %s201, %s204
      %p210 = scmp.eq.s32.totalorder %s18, 0
      %p211 = por %p209, %p210
      %p212 = scmp.ne.s32.totalorder %s201, %s204
      %p213 = scmp.eq.s32.totalorder %s23, 1
      %p214 = por %p212, %p213
      %p215 = scmp.ne.s32.totalorder %s204, %s205
      %p216 = scmp.eq.s32.totalorder %s23, 0
      %p217 = por %p215, %p216
      %p218 = scmp.ne.s32.totalorder %s204, %s205
      %p219 = scmp.eq.s32.totalorder %s24, 1
      %p220 = por %p218, %p219
      %p222 = scmp.ne.s32.totalorder %s205, %s221
      %p223 = scmp.eq.s32.totalorder %s24, 0
      %p224 = por %p222, %p223
      %p225 = scmp.le.s32.totalorder 1, %s18
      %p226 = scmp.lt.s32.totalorder %s18, 3
      %p227 = pnand %p225, %p226
      %p228 = pneg %p227
      // Predicated region
      $region9: #{tpu_custom_call.1} parent=5 // pred_check
        _
      $region10: #{tpu_custom_call.1} parent=5 // pred_check_branch
        %230 = sbr.rel (%p227) target = $region12
      $region11: #{tpu_custom_call.1} parent=5 // pred_region
        %s231 = ssub.s32 %s18, 1
        // Predicated region
        $region13: #{tpu_custom_call.1} parent=11 // pred_check
          %p232 = pneg %p39
        $region14: #{tpu_custom_call.1} parent=11 // pred_check_branch
          %234 = sbr.rel (%p232) target = $region16
        $region15: #{tpu_custom_call.1} parent=11 // pred_region
          %s236 = ssub.s32 64, 64
          %237 = vsyncadd [#allocation6], %s236
          %s239 = sshll.u32 %s0, 4
          %s240 = int_to_ptr.vmem [resolvable:$true] %s239
          %242 = dma.vmem_to_smem %s240, 64, [#allocation4], [#allocation6]
        $region16: #{tpu_custom_call.1} parent=11 // pred_fallthru
          _
        // Predicated region
        $region17: #{tpu_custom_call.1} parent=11 // pred_check
          %p243 = pneg %p86
        $region18: #{tpu_custom_call.1} parent=11 // pred_check_branch
          %245 = sbr.rel (%p243) target = $region20
        $region19: #{tpu_custom_call.1} parent=11 // pred_region
          _
        $region20: #{tpu_custom_call.1} parent=11 // pred_fallthru
          _
        // Predicated region
        $region21: #{tpu_custom_call.1} parent=11 // pred_check
          %p246 = pneg %p107
        $region22: #{tpu_custom_call.1} parent=11 // pred_check_branch
          %248 = sbr.rel (%p246) target = $region24
        $region23: #{tpu_custom_call.1} parent=11 // pred_region
          _
        $region24: #{tpu_custom_call.1} parent=11 // pred_fallthru
          _
        // Predicated region
        $region25: #{tpu_custom_call.1} parent=11 // pred_check
          %p249 = pneg %p128
        $region26: #{tpu_custom_call.1} parent=11 // pred_check_branch
          %251 = sbr.rel (%p249) target = $region28
        $region27: #{tpu_custom_call.1} parent=11 // pred_region
          _
        $region28: #{tpu_custom_call.1} parent=11 // pred_fallthru
          _
        // Predicated region
        $region29: #{tpu_custom_call.1} parent=11 // pred_check
          %p252 = pneg %p149
        $region30: #{tpu_custom_call.1} parent=11 // pred_check_branch
          %254 = sbr.rel (%p252) target = $region32
        $region31: #{tpu_custom_call.1} parent=11 // pred_region
          _
        $region32: #{tpu_custom_call.1} parent=11 // pred_fallthru
          _
        // Predicated region
        $region33: #{tpu_custom_call.1} parent=11 // pred_check
          %p255 = pneg %p170
        $region34: #{tpu_custom_call.1} parent=11 // pred_check_branch
          %257 = sbr.rel (%p255) target = $region36
        $region35: #{tpu_custom_call.1} parent=11 // pred_region
          _
        $region36: #{tpu_custom_call.1} parent=11 // pred_fallthru
          _
        // Predicated region
        $region37: #{tpu_custom_call.1} parent=11 // pred_check
          %p258 = pneg %p191
        $region38: #{tpu_custom_call.1} parent=11 // pred_check_branch
          %260 = sbr.rel (%p258) target = $region40
        $region39: #{tpu_custom_call.1} parent=11 // pred_region
          _
        $region40: #{tpu_custom_call.1} parent=11 // pred_fallthru
          _
      $region12: #{tpu_custom_call.1} parent=5 // pred_fallthru
        _
      %p261 = scmp.lt.s32.totalorder %s18, 2
      // Predicated region
      $region41: #{tpu_custom_call.1} parent=5 // pred_check
        %p262 = pneg %p261
      $region42: #{tpu_custom_call.1} parent=5 // pred_check_branch
        %264 = sbr.rel (%p262) target = $region44
      $region43: #{tpu_custom_call.1} parent=5 // pred_region
        // Predicated region
        $region45: #{tpu_custom_call.1} parent=43 // pred_check
          %p265 = pneg %p59
        $region46: #{tpu_custom_call.1} parent=43 // pred_check_branch
          %267 = sbr.rel (%p265) target = $region48
        $region47: #{tpu_custom_call.1} parent=43 // pred_region
          %p268 = scmp.lt.s32.totalorder %s18, 1
          %s269 = scalar_select %p268, %s18, 1
          %s270 = smul.addr %s269, 2
          %s271 = smul.addr %s270, 8
          %s272 = scalar_lea.vmem %s1, %s271
        $region48: #{tpu_custom_call.1} parent=43 // pred_fallthru
          _
      $region44: #{tpu_custom_call.1} parent=5 // pred_fallthru
        _
      %p273 = scmp.le.s32.totalorder 1, %s18
      %p274 = scmp.lt.s32.totalorder %s18, 3
      %p275 = pnand %p273, %p274
      %p276 = pneg %p275
      // Predicated region
      $region49: #{tpu_custom_call.1} parent=5 // pred_check
        _
      $region50: #{tpu_custom_call.1} parent=5 // pred_check_branch
        %278 = sbr.rel (%p275) target = $region52
      $region51: #{tpu_custom_call.1} parent=5 // pred_region
        %s279 = ssub.s32 %s18, 1
        // Predicated region
        $region53: #{tpu_custom_call.1} parent=51 // pred_check
          %p280 = pneg %p39
        $region54: #{tpu_custom_call.1} parent=51 // pred_check_branch
          %282 = sbr.rel (%p280) target = $region56
        $region55: #{tpu_custom_call.1} parent=51 // pred_region
          %283 = dma.done [#allocation6], 64
        $region56: #{tpu_custom_call.1} parent=51 // pred_fallthru
          _
        %284 = sfence
        %p285 = pneg %p39
        %p286 = pneg %p36
        %p287 = scmp.lt.s32.totalorder %s23, 1
        %s288 = scalar_select %p287, %s23, 1
        %s289 = smul.addr %s288, 2
        %s290 = smul.addr %s289, 8
        %s291 = scalar_lea.vmem %s1, %s290
        %p292 = pneg %p65
        %p293 = pneg %p62
        %p294 = pneg %p86
        %p295 = pneg %p83
        %p296 = pneg %p107
        %p297 = pneg %p104
        %p298 = pneg %p128
        %p299 = pneg %p125
        %p300 = pneg %p149
        %p301 = pneg %p146
        %p302 = pneg %p170
        %p303 = pneg %p167
        %p304 = pneg %p191
        %p305 = pneg %p188
        %p306 = pneg %p217
        %p307 = pneg %p214
        %s308 = sand.u32 %s204, 1
        %s309 = scalar_lea.sflag [#allocation5], %s308
        %s310 = sand.u32 %s204, 1
        %s311 = smul.addr %s310, 16
        %s312 = scalar_lea.vmem [#allocation7], %s311
        %p313 = scmp.lt.s32.totalorder %s23, 1
        %s314 = scalar_select %p313, %s23, 1
        %s315 = smul.addr %s314, 2
        %s316 = smul.addr %s315, 8
        %s317 = scalar_lea.vmem %s1, %s316
        %v319 = vld [vmem:[%s317] sm:$0xff]
        %v320 = vld [vmem:[%s317 + $0x8] sm:$0xff]
        %s321 = sld [smem:[#allocation4]]
        %s322 = sld [smem:[#allocation4 + $0x1]]
        %v323 = vsub.f32 %v319, %v319
        %v324 = vsub.f32 %v320, %v320
        %v325 = vmul.f32 %v323, 316.22778
        %v326 = vmul.f32 %v324, 316.22778
        %v327 = vstv %s321
        %v328 = vmul.f32 %v325, %v327
        %v329 = vmul.f32 %v326, %v327
        %v330 = vstv %s322
        %v331 = vadd.f32 %v328, %v330
        %v332 = vadd.f32 %v329, %v330
        %v333 = vmax.f32 %v331, 0.0
        %v334 = vmax.f32 %v332, 0.0
        %v335 = vld [vmem:[%s2] sm:$0xf]
        %v336 = vpack.c.bf16 %v334, %v333
        %v337 = vld [vmem:[%s3] sm:$0xff]
        %339 = vset.pattern.permute.xlu0 0
        %340 = vperm.xlu0 %339, %v337
        %v341 = vpop.permute.xlu0 %340
        %vm343 = vcmask 130048
        %v345 = vsel %vm343, %v335, 0
        %347 = vmatprep.subr.bf16.mxu0 0
        %348 = vmatpush1.bf16.msra.mxu0 %v336
        %349 = vmatprep.subr.bf16.mxu0 0
        %350 = vmatpush1.bf16.msra.mxu0 0
        %351 = vmatprep.subr.bf16.mxu0 0
        %352 = vmatpush1.bf16.msra.mxu0 0
        %353 = vmatprep.subr.bf16.mxu0 0
        %354 = vmatpush1.bf16.msra.mxu0 0
        %355 = vmatprep.subr.bf16.mxu0 0
        %356 = vmatpush1.bf16.msra.mxu0 0
        %357 = vmatprep.subr.bf16.mxu0 0
        %358 = vmatpush1.bf16.msra.mxu0 0
        %359 = vmatprep.subr.bf16.mxu0 0
        %360 = vmatpush1.bf16.msra.mxu0 0
        %361 = vmatprep.subr.bf16.mxu0 0
        %362 = vmatpush1.bf16.msra.mxu0 0
        %363 = vmatprep.subr.bf16.mxu0 0
        %364 = vmatpush1.bf16.msra.mxu0 0
        %365 = vmatprep.subr.bf16.mxu0 0
        %366 = vmatpush1.bf16.msra.mxu0 0
        %367 = vmatprep.subr.bf16.mxu0 0
        %368 = vmatpush1.bf16.msra.mxu0 0
        %369 = vmatprep.subr.bf16.mxu0 0
        %370 = vmatpush1.bf16.msra.mxu0 0
        %371 = vmatprep.subr.bf16.mxu0 0
        %372 = vmatpush1.bf16.msra.mxu0 0
        %373 = vmatprep.subr.bf16.mxu0 0
        %374 = vmatpush1.bf16.msra.mxu0 0
        %375 = vmatprep.subr.bf16.mxu0 0
        %376 = vmatpush1.bf16.msra.mxu0 0
        %377 = vmatprep.subr.bf16.mxu0 0
        %378 = vmatpush1.bf16.msra.mxu0 0
        %379 = vmatprep.mubr.bf16.mxu0 0
        %380 = vmatmul.mubr.bf16.gmra.mrb[0].mxu0 %v345
        %v381 = vpop.f32.mrb[0].mxu0
        %v382 = vadd.f32 %v341, %v381
        %v383 = vpop.f32.mrb[0].mxu0
        %v384 = vpop.f32.mrb[0].mxu0
        %v385 = vpop.f32.mrb[0].mxu0
        %386 = vdwg.mxu0
        %s387 = sld [smem:[#allocation4 + $0x80]]
        %s388 = sld [smem:[#allocation4 + $0x81]]
        %v389 = vsub.f32 %v382, %v382
        %v390 = vmul.f32 %v389, 316.22778
        %v391 = vstv %s387
        %v392 = vmul.f32 %v390, %v391
        %v393 = vstv %s388
        %v394 = vadd.f32 %v392, %v393
        %v395 = vmax.f32 %v394, 0.0
        %vm396 = vcmask 15360
        %397 = vst.msk [vmem:[#allocation2] sm:$0xff] %vm396, 0.0
        %vm398 = vcmask 31760
        %399 = vst.msk [vmem:[#allocation2 + $0x8] sm:$0xff] %vm398, 0.0
        %401 = vrot.lane.b32.xlu0 %v395, 2
        %v402 = vpop.permute.xlu0 %401
        %vm404 = vcmask 1047568
        %405 = vst.msk [vmem:[#allocation2] sm:$0xff] %vm404, %v402
        %406 = vst.msk [vmem:[#allocation2 + $0x8] sm:$0xff] %vm396, %v402
        %v407 = vld [vmem:[#allocation2] sm:$0xff]
        %v408 = vld [vmem:[#allocation2 + $0x8] sm:$0xff]
        %409 = vst [vmem:[#allocation3] sm:$0xff] %v407
        %412 = vrot.lane.b32.xlu0 %v407, 126
        %v413 = vpop.permute.xlu0 %412
        %414 = vrot.lane.b32.xlu0 %v408, 126
        %v415 = vpop.permute.xlu0 %414
        %vm416 = vcmask 1031168
        %v417 = vsel %vm416, %v413, %v415
        %419 = vst [vmem:[#allocation3 + $0x8] sm:$0xff] %v417
        %420 = vrot.lane.b32.xlu0 %v407, 124
        %v421 = vpop.permute.xlu0 %420
        %422 = vrot.lane.b32.xlu0 %v408, 124
        %v423 = vpop.permute.xlu0 %422
        %vm424 = vcmask 1014784
        %v425 = vsel %vm424, %v421, %v423
        %427 = vst [vmem:[#allocation3 + $0x10] sm:$0xff] %v425
        %v428 = vld [vmem:[%s4] sm:$0xf]
        %v429 = vld [vmem:[#allocation3] sm:$0xff]
        %v430 = vld [vmem:[#allocation3 + $0x8] sm:$0xff]
        %v431 = vld [vmem:[#allocation3 + $0x10] sm:$0xff]
        %v432 = vpack.c.bf16 %v430, %v429
        %v433 = vpack.c.bf16 %v431, %v431
        %v434 = vld [vmem:[%s5] sm:$0xff]
        %436 = vset.pattern.permute.xlu0 0
        %437 = vperm.xlu0 %436, %v434
        %v438 = vpop.permute.xlu0 %437
        %vm440 = vcmask 195584
        %v442 = vsel %vm440, %v428, 0
        %vm444 = vcmask 1043456
        %v446 = vsel %vm444, %v433, 0
        %448 = vmatprep.subr.bf16.mxu0 0
        %449 = vmatpush1.bf16.msra.mxu0 %v432
        %450 = vmatprep.subr.bf16.mxu0 0
        %451 = vmatpush1.bf16.msra.mxu0 %v446
        %452 = vmatprep.subr.bf16.mxu0 0
        %453 = vmatpush1.bf16.msra.mxu0 0
        %454 = vmatprep.subr.bf16.mxu0 0
        %455 = vmatpush1.bf16.msra.mxu0 0
        %456 = vmatprep.subr.bf16.mxu0 0
        %457 = vmatpush1.bf16.msra.mxu0 0
        %458 = vmatprep.subr.bf16.mxu0 0
        %459 = vmatpush1.bf16.msra.mxu0 0
        %460 = vmatprep.subr.bf16.mxu0 0
        %461 = vmatpush1.bf16.msra.mxu0 0
        %462 = vmatprep.subr.bf16.mxu0 0
        %463 = vmatpush1.bf16.msra.mxu0 0
        %464 = vmatprep.subr.bf16.mxu0 0
        %465 = vmatpush1.bf16.msra.mxu0 0
        %466 = vmatprep.subr.bf16.mxu0 0
        %467 = vmatpush1.bf16.msra.mxu0 0
        %468 = vmatprep.subr.bf16.mxu0 0
        %469 = vmatpush1.bf16.msra.mxu0 0
        %470 = vmatprep.subr.bf16.mxu0 0
        %471 = vmatpush1.bf16.msra.mxu0 0
        %472 = vmatprep.subr.bf16.mxu0 0
        %473 = vmatpush1.bf16.msra.mxu0 0
        %474 = vmatprep.subr.bf16.mxu0 0
        %475 = vmatpush1.bf16.msra.mxu0 0
        %476 = vmatprep.subr.bf16.mxu0 0
        %477 = vmatpush1.bf16.msra.mxu0 0
        %478 = vmatprep.subr.bf16.mxu0 0
        %479 = vmatpush1.bf16.msra.mxu0 0
        %480 = vmatprep.mubr.bf16.mxu0 0
        %481 = vmatmul.mubr.bf16.gmra.mrb[0].mxu0 %v442
        %v482 = vpop.f32.mrb[0].mxu0
        %v483 = vadd.f32 %v438, %v482
        %v484 = vpop.f32.mrb[0].mxu0
        %v485 = vpop.f32.mrb[0].mxu0
        %v486 = vpop.f32.mrb[0].mxu0
        %487 = vdwg.mxu0
        %s488 = sld [smem:[#allocation4 + $0x100]]
        %s489 = sld [smem:[#allocation4 + $0x101]]
        %v490 = vsub.f32 %v483, %v483
        %v491 = vmul.f32 %v490, 316.22778
        %v492 = vstv %s488
        %v493 = vmul.f32 %v491, %v492
        %v494 = vstv %s489
        %v495 = vadd.f32 %v493, %v494
        %v496 = vmax.f32 %v495, 0.0
        %v497 = vld [vmem:[%s6] sm:$0xf]
        %v498 = vld [vmem:[%s6 + $0x4] sm:$0xf]
        %v499 = vpack.c.bf16 %v496, %v496
        %v500 = vld [vmem:[%s7] sm:$0xff]
        %v501 = vld [vmem:[%s7 + $0x8] sm:$0xff]
        %503 = vset.pattern.permute.xlu0 0
        %504 = vperm.xlu0 %503, %v500
        %v505 = vpop.permute.xlu0 %504
        %508 = vset.pattern.permute.xlu0 0
        %509 = vperm.xlu0 %508, %v501
        %v510 = vpop.permute.xlu0 %509
        %v514 = vunpack.c.l.b16 %v497
        %v515 = vunpack.c.l.b16 %v498
        %v516 = vpack.c.b16 %v515, %v514
        %vm517 = vcmask 64512
        %v519 = vsel %vm517, %v516, 0
        %v522 = vsel %vm444, %v499, 0
        %524 = vmatprep.subr.bf16.mxu0 0
        %525 = vmatpush1.bf16.msra.mxu0 %v522
        %526 = vmatprep.subr.bf16.mxu0 0
        %527 = vmatpush1.bf16.msra.mxu0 0
        %528 = vmatprep.subr.bf16.mxu0 0
        %529 = vmatpush1.bf16.msra.mxu0 0
        %530 = vmatprep.subr.bf16.mxu0 0
        %531 = vmatpush1.bf16.msra.mxu0 0
        %532 = vmatprep.subr.bf16.mxu0 0
        %533 = vmatpush1.bf16.msra.mxu0 0
        %534 = vmatprep.subr.bf16.mxu0 0
        %535 = vmatpush1.bf16.msra.mxu0 0
        %536 = vmatprep.subr.bf16.mxu0 0
        %537 = vmatpush1.bf16.msra.mxu0 0
        %538 = vmatprep.subr.bf16.mxu0 0
        %539 = vmatpush1.bf16.msra.mxu0 0
        %540 = vmatprep.subr.bf16.mxu0 0
        %541 = vmatpush1.bf16.msra.mxu0 0
        %542 = vmatprep.subr.bf16.mxu0 0
        %543 = vmatpush1.bf16.msra.mxu0 0
        %544 = vmatprep.subr.bf16.mxu0 0
        %545 = vmatpush1.bf16.msra.mxu0 0
        %546 = vmatprep.subr.bf16.mxu0 0
        %547 = vmatpush1.bf16.msra.mxu0 0
        %548 = vmatprep.subr.bf16.mxu0 0
        %549 = vmatpush1.bf16.msra.mxu0 0
        %550 = vmatprep.subr.bf16.mxu0 0
        %551 = vmatpush1.bf16.msra.mxu0 0
        %552 = vmatprep.subr.bf16.mxu0 0
        %553 = vmatpush1.bf16.msra.mxu0 0
        %554 = vmatprep.subr.bf16.mxu0 0
        %555 = vmatpush1.bf16.msra.mxu0 0
        %556 = vmatprep.mubr.bf16.mxu0 0
        %557 = vmatmul.mubr.bf16.gmra.mrb[0].mxu0 %v519
        %v558 = vpop.f32.mrb[0].mxu0
        %v559 = vadd.f32 %v505, %v558
        %v560 = vpop.f32.mrb[0].mxu0
        %v561 = vpop.f32.mrb[0].mxu0
        %v562 = vadd.f32 %v510, %v561
        %v563 = vpop.f32.mrb[0].mxu0
        %564 = vdwg.mxu0
        %v565 = vadd.f32 %v559, %v319
        %v566 = vadd.f32 %v562, %v320
        %567 = vst [vmem:[%s312] sm:$0xff] %v565
        %568 = vst [vmem:[%s312 + $0x8] sm:$0xff] %v566
        %s569 = sand.u32 %s204, 1
        %s570 = scalar_lea.sflag [#allocation5], %s569
        %s571 = sand.u32 %s204, 1
        %s572 = smul.addr %s571, 16
        %s573 = scalar_lea.vmem [#allocation7], %s572
        // Predicated region
        $region57: #{tpu_custom_call.1} parent=51 // pred_check
          %p574 = pneg %p214
        $region58: #{tpu_custom_call.1} parent=51 // pred_check_branch
          %576 = sbr.rel (%p574) target = $region60
        $region59: #{tpu_custom_call.1} parent=51 // pred_region
          %s578 = ssub.s32 256, 256
          %579 = vsyncadd %s570, %s578
          %s580 = smul.addr %s23, 2
          %s581 = smul.addr %s580, 128
          %s582 = scalar_lea.hbm %s8, %s581
          %s583 = sshll.u32 %s573, 4
          %s584 = int_to_ptr.vmem [resolvable:$true] %s583
          %589 = dma.vmem_to_hbm [thread:$0]  %s584, 256, %s582, %s570, 128, 128, 8
        $region60: #{tpu_custom_call.1} parent=51 // pred_fallthru
          _
      $region52: #{tpu_custom_call.1} parent=5 // pred_fallthru
        _
      %p590 = scmp.le.s32.totalorder 2, %s18
      // Predicated region
      $region61: #{tpu_custom_call.1} parent=5 // pred_check
        %p591 = pneg %p590
      $region62: #{tpu_custom_call.1} parent=5 // pred_check_branch
        %593 = sbr.rel (%p591) target = $region64
      $region63: #{tpu_custom_call.1} parent=5 // pred_region
        %s594 = ssub.s32 %s18, 2
        // Predicated region
        $region65: #{tpu_custom_call.1} parent=63 // pred_check
          %p595 = pneg %p220
        $region66: #{tpu_custom_call.1} parent=63 // pred_check_branch
          %597 = sbr.rel (%p595) target = $region68
        $region67: #{tpu_custom_call.1} parent=63 // pred_region
          %s598 = sand.u32 %s205, 1
          %s599 = scalar_lea.sflag [#allocation5], %s598
          %s600 = sand.u32 %s205, 1
          %s601 = smul.addr %s600, 16
          %s602 = scalar_lea.vmem [#allocation7], %s601
          %603 = dma.done %s599, 256
        $region68: #{tpu_custom_call.1} parent=63 // pred_fallthru
          _
      $region64: #{tpu_custom_call.1} parent=5 // pred_fallthru
        _
    $region6: #{tpu_custom_call.1} parent=1 // loop_footer
      %s22 = sadd.s32 1, %s18
    $region7: #{tpu_custom_call.1} parent=1 // loop_footer_branch
      %17 = sbr.rel target = $region3
    $region8: #{tpu_custom_call.1} parent=1 // loop_exit
      _
    %604 = vsyncpa [#allocation5], 1
    %s605 = scalar_lea.sflag [#allocation5], 1
    %606 = vsyncpa %s605, 1
    %607 = vsyncpa [#allocation6], 1
    %s608 = scalar_lea.sflag [#allocation6], 1
    %609 = vsyncpa %s608, 1

</llo_original>
